<compile_context>
chip_gen: v5e
topology: v5e:2x2
jax: 0.10.0
libtpu: 0.0.40
codegen_flags: <defaults>
</compile_context>

<pallas_src>
import functools

import jax
import jax.numpy as jnp
from jax.experimental import pallas as pl
from jax.experimental.pallas import tpu as pltpu


def _xent_kernel(z_ref, lab_ref, nll_ref, m_sc, l_sc, g_sc, *,
                 n_actual, c_actual):
    # z_ref:   (tile_n, tile_c) logits tile (any float dtype; upcast here)
    # lab_ref: (tile_n, 1) int32 labels for this row tile
    # nll_ref: (tile_n, 1) f32 per-sample NLL output (written at last C tile)
    # m_sc/l_sc/g_sc: (tile_n, 1) f32 running max / running sum-of-exp /
    #                 running label-logit accumulators
    i = pl.program_id(0)          # N-tile index  (parallel axis)
    k = pl.program_id(1)          # C-tile index  (reduction axis, innermost)

    @pl.when(k == 0)
    def _():
        m_sc[...] = jnp.full_like(m_sc, -jnp.inf)
        l_sc[...] = jnp.zeros_like(l_sc)
        g_sc[...] = jnp.zeros_like(g_sc)

    z = z_ref[...].astype(jnp.float32)            # (tile_n, tile_c)
    tn, tc = z.shape
    labels = lab_ref[...]                         # (tile_n, 1) int32

    # k-invariant column iota (reused for tail mask and label select).
    col_ids = jax.lax.broadcasted_iota(jnp.int32, (tn, tc), 1)

    # Mask the ragged tail of the last C tile BEFORE max/exp: out-of-bounds
    # columns contain uninitialized VMEM garbage.  Statically skipped when C
    # is tile-aligned.
    if c_actual % tc != 0:
        c_remaining = c_actual - k * tc
        z = jnp.where(col_ids < c_remaining, z, -1e30)

    # --- label logit: shifted-label compare (column op, not full-tile add) ---
    eq = col_ids == (labels - k * tc)

    # Compute tile max and label-select on the same z traversal (shares vector
    # loads — matters on v5e's 2 vld slots), before the exp pass.
    tile_max = jnp.max(z, axis=-1, keepdims=True)
    g_sc[...] += jnp.sum(jnp.where(eq, z, 0.0), axis=-1, keepdims=True)

    # --- online logsumexp over the C axis ---
    m_prev = m_sc[...]
    m_new = jnp.maximum(m_prev, tile_max)
    alpha = jnp.exp(m_prev - m_new)
    l_sc[...] = alpha * l_sc[...] + jnp.sum(jnp.exp(z - m_new),
                                            axis=-1, keepdims=True)
    m_sc[...] = m_new

    @pl.when(k == pl.num_programs(1) - 1)
    def _():
        lse = m_sc[...] + jnp.log(l_sc[...])
        nll = lse - g_sc[...]
        if n_actual % tn != 0:
            # rows beyond N in the last row tile hold garbage; zero them
            # (defensive — partial output blocks are also clipped on writeback)
            row_ids = i * tn + jax.lax.broadcasted_iota(jnp.int32, (tn, 1), 0)
            nll = jnp.where(row_ids < n_actual, nll, 0.0)
        nll_ref[...] = nll


def _round_up(x, m):
    return ((x + m - 1) // m) * m


def _pick_tiles(n, c, tile_n, tile_c):
    # C tile: lane-aligned (multiple of 128) or the full C dim if C is small.
    if c <= 128:
        tile_c = c
    else:
        tile_c = min(_round_up(tile_c, 128), _round_up(c, 128))
    # N tile: sublane-aligned (multiple of 8) or the full N dim if N is tiny.
    # Prefer >= 2 N tiles so the 'parallel' axis shards across v7x's 2 TCs.
    if n <= 8:
        tile_n = n
    else:
        cap = _round_up(n, 8)
        if n >= 16:
            cap = min(cap, _round_up((n + 1) // 2, 8))
        tile_n = min(_round_up(tile_n, 8), cap)
    return tile_n, tile_c


def xent_rot_random(z, labels, key=None, multiplier=2,
                    tile_n=256, tile_c=8192, z_buffer_count=2):
    """JAX/Pallas equivalent of Xent_rot_random.forward (non-distributed).

    `z` is streamed in its native dtype (pass bf16 logits to halve HBM
    traffic); all math is done in f32 inside the kernel.
    """
    n, c = z.shape
    assert n % multiplier == 0
    # `key` kept for API fidelity: the module's joint random permutation of
    # (z, labels) does not change mean cross-entropy, so no gather is issued.
    del key
    # TODO(synk): distributed=True path (dist.all_gather of z/labels) is a
    # multi-host collective outside a single-kernel scope; not implemented.

    tile_n, tile_c = _pick_tiles(n, c, tile_n, tile_c)
    grid = (pl.cdiv(n, tile_n), pl.cdiv(c, tile_c))

    lab = labels.astype(jnp.int32).reshape(n, 1)

    kernel = functools.partial(_xent_kernel, n_actual=n, c_actual=c)

    z_spec_kwargs = {}
    if z_buffer_count != 2:
        z_spec_kwargs["pipeline_mode"] = pl.Buffered(z_buffer_count)
    z_spec = pl.BlockSpec((tile_n, tile_c), lambda i, k: (i, k),
                          **z_spec_kwargs)

    # Explicit scoped-VMEM budget: z buffers dominate; leave a few MiB of
    # headroom for labels/output/scratch.  Stays <= ~40 MiB with the defaults
    # (v7x has only 64 MiB physical VMEM per TC).
    block_bytes = tile_n * tile_c * jnp.dtype(z.dtype).itemsize
    vmem_limit = int(max(32 << 20, z_buffer_count * block_bytes + (6 << 20)))

    nll = pl.pallas_call(
        kernel,
        out_shape=jax.ShapeDtypeStruct((n, 1), jnp.float32),
        grid_spec=pltpu.PrefetchScalarGridSpec(
            num_scalar_prefetch=0,
            grid=grid,
            in_specs=[
                z_spec,
                pl.BlockSpec((tile_n, 1), lambda i, k: (i, 0)),
            ],
            out_specs=pl.BlockSpec((tile_n, 1), lambda i, k: (i, 0)),
            scratch_shapes=[
                pltpu.VMEM((tile_n, 1), jnp.float32),   # running max
                pltpu.VMEM((tile_n, 1), jnp.float32),   # running sum of exp
                pltpu.VMEM((tile_n, 1), jnp.float32),   # label logit
            ],
        ),
        compiler_params=pltpu.CompilerParams(
            dimension_semantics=("parallel", "arbitrary"),
            vmem_limit_bytes=vmem_limit,
        ),
    )(z, lab)

    # Global mean over the TRUE sample count.
    return jnp.sum(nll) / n


def _reference_loss(z, labels):
    # pure-JAX reference: mean cross entropy (matches torch CrossEntropyLoss)
    z = z.astype(jnp.float32)
    logp = jax.nn.log_softmax(z, axis=-1)
    nll = -jnp.take_along_axis(logp, labels[:, None].astype(jnp.int32), axis=-1)
    return jnp.mean(nll)


if __name__ == "__main__":
    key = jax.random.PRNGKey(0)
    k_z, k_lab, k_perm, k_z2, k_lab2, k_z3, k_lab3 = jax.random.split(key, 7)

    # --- small case: single tile, f32 ---
    N, C = 8, 32
    z = jax.random.normal(k_z, (N, C), dtype=jnp.float32)
    labels = jax.random.randint(k_lab, (N,), 0, C, dtype=jnp.int32)

    loss = xent_rot_random(z, labels, k_perm, multiplier=2)
    loss = jax.block_until_ready(loss)
    ref = _reference_loss(z, labels)
    assert jnp.allclose(loss, ref, atol=1e-5, rtol=1e-5), (loss, ref)

    # --- multi-tile N and C with ragged tails (in-kernel masking, online LSE) ---
    N2, C2 = 20, 300
    z2 = jax.random.normal(k_z2, (N2, C2), dtype=jnp.float32)
    labels2 = jax.random.randint(k_lab2, (N2,), 0, C2, dtype=jnp.int32)

    loss2 = xent_rot_random(z2, labels2, k_perm, multiplier=2,
                            tile_n=8, tile_c=128)
    loss2 = jax.block_until_ready(loss2)
    ref2 = _reference_loss(z2, labels2)
    assert jnp.allclose(loss2, ref2, atol=1e-5, rtol=1e-5), (loss2, ref2)

    # --- bf16 streaming path (native-dtype blocks, f32 math in kernel) ---
    N3, C3 = 16, 300
    z3 = jax.random.normal(k_z3, (N3, C3), dtype=jnp.float32).astype(jnp.bfloat16)
    labels3 = jax.random.randint(k_lab3, (N3,), 0, C3, dtype=jnp.int32)

    loss3 = xent_rot_random(z3, labels3, k_perm, multiplier=2)
    loss3 = jax.block_until_ready(loss3)
    ref3 = _reference_loss(z3.astype(jnp.float32), labels3)
    assert jnp.allclose(loss3, ref3, atol=2e-4, rtol=2e-4), (loss3, ref3)

    print("KERNEL_OK")
</pallas_src>

<mosaic_0001>
module attributes {stable_mosaic.version = 11 : i64} {
  func.func @_xent_kernel(%arg0: i32, %arg1: i32, %arg2: memref<8x32xf32, #tpu.memory_space<vmem>>, %arg3: memref<8x1xi32, #tpu.memory_space<vmem>>, %arg4: memref<8x1xf32, #tpu.memory_space<vmem>>, %arg5: memref<8x1xf32, #tpu.memory_space<vmem>>, %arg6: memref<8x1xf32, #tpu.memory_space<vmem>>, %arg7: memref<8x1xf32, #tpu.memory_space<vmem>>) attributes {dimension_semantics = [#tpu.dimension_semantics<parallel>, #tpu.dimension_semantics<arbitrary>], iteration_bounds = array<i64: 1, 1>, scalar_prefetch = 0 : i64, scratch_operands = 3 : i64, tpu.core_type = #tpu.core_type<tc>, window_params = [{transform_indices = @transform_0, window_bounds = array<i64: 8, 32>}, {transform_indices = @transform_1, window_bounds = array<i64: 8, 1>}, {transform_indices = @transform_2, window_bounds = array<i64: 8, 1>}]} {
    %c0_i32 = arith.constant 0 : i32
    %0 = arith.cmpi eq, %arg1, %c0_i32 : i32
    %1 = arith.extui %0 : i1 to i32
    %c0_i32_0 = arith.constant 0 : i32
    %2 = arith.cmpi ne, %1, %c0_i32_0 : i32
    scf.if %2 {
      %cst_21 = arith.constant 0xFF800000 : f32
      %37 = vector.broadcast %cst_21 : f32 to vector<8x1xf32>
      %c0_22 = arith.constant 0 : index
      %c0_23 = arith.constant 0 : index
      %38 = vector.load %arg5[%c0_22, %c0_23] : memref<8x1xf32, #tpu.memory_space<vmem>>, vector<8x1xf32>
      tpu.vector_store %arg5[%c0_22, %c0_23], %37 {strides = array<i32>} : memref<8x1xf32, #tpu.memory_space<vmem>>, vector<8x1xf32>,
      %cst_24 = arith.constant 0.000000e+00 : f32
      %39 = vector.broadcast %cst_24 : f32 to vector<8x1xf32>
      %c0_25 = arith.constant 0 : index
      %c0_26 = arith.constant 0 : index
      %40 = vector.load %arg6[%c0_25, %c0_26] : memref<8x1xf32, #tpu.memory_space<vmem>>, vector<8x1xf32>
      tpu.vector_store %arg6[%c0_25, %c0_26], %39 {strides = array<i32>} : memref<8x1xf32, #tpu.memory_space<vmem>>, vector<8x1xf32>,
      %cst_27 = arith.constant 0.000000e+00 : f32
      %41 = vector.broadcast %cst_27 : f32 to vector<8x1xf32>
      %c0_28 = arith.constant 0 : index
      %c0_29 = arith.constant 0 : index
      %42 = vector.load %arg7[%c0_28, %c0_29] : memref<8x1xf32, #tpu.memory_space<vmem>>, vector<8x1xf32>
      tpu.vector_store %arg7[%c0_28, %c0_29], %41 {strides = array<i32>} : memref<8x1xf32, #tpu.memory_space<vmem>>, vector<8x1xf32>,
    } else {
    }
    %c0 = arith.constant 0 : index
    %c0_1 = arith.constant 0 : index
    %3 = vector.load %arg2[%c0, %c0_1] : memref<8x32xf32, #tpu.memory_space<vmem>>, vector<8x32xf32>
    %c0_2 = arith.constant 0 : index
    %c0_3 = arith.constant 0 : index
    %4 = vector.load %arg3[%c0_2, %c0_3] : memref<8x1xi32, #tpu.memory_space<vmem>>, vector<8x1xi32>
    %5 = tpu.iota {dimensions = array<i32: 1>} : vector<8x32xi32>
    %c32_i32 = arith.constant 32 : i32
    %6 = arith.muli %arg1, %c32_i32 : i32
    %7 = vector.broadcast %6 : i32 to vector<8x1xi32>
    %8 = arith.subi %4, %7 : vector<8x1xi32>
    %9 = vector.broadcast %8 : vector<8x1xi32> to vector<8x32xi32>
    %10 = arith.cmpi eq, %5, %9 : vector<8x32xi32>
    %cst = arith.constant dense<0xFF800000> : vector<8xf32>
    %11 = vector.multi_reduction <maximumf>, %3, %cst [1] : vector<8x32xf32> to vector<8xf32>
    %12 = vector.shape_cast %11 : vector<8xf32> to vector<8x1xf32>
    %c0_4 = arith.constant 0 : index
    %c0_5 = arith.constant 0 : index
    %13 = vector.load %arg7[%c0_4, %c0_5] : memref<8x1xf32, #tpu.memory_space<vmem>>, vector<8x1xf32>
    %cst_6 = arith.constant 0.000000e+00 : f32
    %14 = vector.broadcast %cst_6 : f32 to vector<8x32xf32>
    %15 = arith.select %10, %3, %14 : vector<8x32xi1>, vector<8x32xf32>
    %cst_7 = arith.constant dense<0.000000e+00> : vector<8xf32>
    %16 = vector.multi_reduction <add>, %15, %cst_7 [1] : vector<8x32xf32> to vector<8xf32>
    %17 = vector.shape_cast %16 : vector<8xf32> to vector<8x1xf32>
    %18 = arith.addf %13, %17 : vector<8x1xf32>
    %c0_8 = arith.constant 0 : index
    %c0_9 = arith.constant 0 : index
    %19 = vector.load %arg7[%c0_8, %c0_9] : memref<8x1xf32, #tpu.memory_space<vmem>>, vector<8x1xf32>
    tpu.vector_store %arg7[%c0_8, %c0_9], %18 {strides = array<i32>} : memref<8x1xf32, #tpu.memory_space<vmem>>, vector<8x1xf32>,
    %c0_10 = arith.constant 0 : index
    %c0_11 = arith.constant 0 : index
    %20 = vector.load %arg5[%c0_10, %c0_11] : memref<8x1xf32, #tpu.memory_space<vmem>>, vector<8x1xf32>
    %21 = arith.maximumf %20, %12 : vector<8x1xf32>
    %22 = arith.subf %20, %21 : vector<8x1xf32>
    %23 = math.exp %22 : vector<8x1xf32>
    %c0_12 = arith.constant 0 : index
    %c0_13 = arith.constant 0 : index
    %24 = vector.load %arg6[%c0_12, %c0_13] : memref<8x1xf32, #tpu.memory_space<vmem>>, vector<8x1xf32>
    %25 = arith.mulf %23, %24 : vector<8x1xf32>
    %26 = vector.broadcast %21 : vector<8x1xf32> to vector<8x32xf32>
    %27 = arith.subf %3, %26 : vector<8x32xf32>
    %28 = math.exp %27 : vector<8x32xf32>
    %cst_14 = arith.constant dense<0.000000e+00> : vector<8xf32>
    %29 = vector.multi_reduction <add>, %28, %cst_14 [1] : vector<8x32xf32> to vector<8xf32>
    %30 = vector.shape_cast %29 : vector<8xf32> to vector<8x1xf32>
    %31 = arith.addf %25, %30 : vector<8x1xf32>
    %c0_15 = arith.constant 0 : index
    %c0_16 = arith.constant 0 : index
    %32 = vector.load %arg6[%c0_15, %c0_16] : memref<8x1xf32, #tpu.memory_space<vmem>>, vector<8x1xf32>
    tpu.vector_store %arg6[%c0_15, %c0_16], %31 {strides = array<i32>} : memref<8x1xf32, #tpu.memory_space<vmem>>, vector<8x1xf32>,
    %c0_17 = arith.constant 0 : index
    %c0_18 = arith.constant 0 : index
    %33 = vector.load %arg5[%c0_17, %c0_18] : memref<8x1xf32, #tpu.memory_space<vmem>>, vector<8x1xf32>
    tpu.vector_store %arg5[%c0_17, %c0_18], %21 {strides = array<i32>} : memref<8x1xf32, #tpu.memory_space<vmem>>, vector<8x1xf32>,
    %c0_i32_19 = arith.constant 0 : i32
    %34 = arith.cmpi eq, %arg1, %c0_i32_19 : i32
    %35 = arith.extui %34 : i1 to i32
    %c0_i32_20 = arith.constant 0 : i32
    %36 = arith.cmpi ne, %35, %c0_i32_20 : i32
    scf.if %36 {
      %c0_21 = arith.constant 0 : index
      %c0_22 = arith.constant 0 : index
      %37 = vector.load %arg5[%c0_21, %c0_22] : memref<8x1xf32, #tpu.memory_space<vmem>>, vector<8x1xf32>
      %c0_23 = arith.constant 0 : index
      %c0_24 = arith.constant 0 : index
      %38 = vector.load %arg6[%c0_23, %c0_24] : memref<8x1xf32, #tpu.memory_space<vmem>>, vector<8x1xf32>
      %39 = math.log %38 : vector<8x1xf32>
      %40 = arith.addf %37, %39 : vector<8x1xf32>
      %c0_25 = arith.constant 0 : index
      %c0_26 = arith.constant 0 : index
      %41 = vector.load %arg7[%c0_25, %c0_26] : memref<8x1xf32, #tpu.memory_space<vmem>>, vector<8x1xf32>
      %42 = arith.subf %40, %41 : vector<8x1xf32>
      %c0_27 = arith.constant 0 : index
      %c0_28 = arith.constant 0 : index
      %43 = vector.load %arg4[%c0_27, %c0_28] : memref<8x1xf32, #tpu.memory_space<vmem>>, vector<8x1xf32>
      tpu.vector_store %arg4[%c0_27, %c0_28], %42 {strides = array<i32>} : memref<8x1xf32, #tpu.memory_space<vmem>>, vector<8x1xf32>,
    } else {
    }
    return
  }
  func.func @transform_0(%arg0: i32, %arg1: i32) -> (i32, i32) {
    %c0_i32 = arith.constant 0 : i32
    return %arg0, %arg1 : i32, i32
  }
  func.func @transform_1(%arg0: i32, %arg1: i32) -> (i32, i32) {
    %c0_i32 = arith.constant 0 : i32
    %c0_i32_0 = arith.constant 0 : i32
    return %arg0, %c0_i32 : i32, i32
  }
  func.func @transform_2(%arg0: i32, %arg1: i32) -> (i32, i32) {
    %c0_i32 = arith.constant 0 : i32
    %c0_i32_0 = arith.constant 0 : i32
    return %arg0, %c0_i32 : i32, i32
  }
}

</mosaic_0001>

<llo_original>
// kernel: tpu_custom_call.1
$region0: #{tpu_custom_call.1}
  #allocation0 [shape = 'u32[]', space=smem, size = 0x4, offset = 0x4, fixed_abs, tag = 'smem constant byte address 0x4 - core index']
  #allocation1 [shape = 'u32[72,128]{1,0:T(1,128)}', space=vmem, size = 0x9000, scoped, tag = 'internal scratch']
  #allocation2 [shape = 'f32[8,1]{1,0:T(8,128)}', space=vmem, size = 0x1000, scoped, tag = 'scratch operand']
  #allocation3 [shape = 'f32[8,1]{1,0:T(8,128)}', space=vmem, size = 0x1000, scoped, tag = 'scratch operand']
  #allocation4 [shape = 'f32[8,1]{1,0:T(8,128)}', space=vmem, size = 0x1000, scoped, tag = 'scratch operand']
  %s0 = inlined_call_operand.vmem [shape: f32[8,32], index: 0, kind: input, shape index: {}]
  %s1 = inlined_call_operand.vmem [shape: s32[8,1], index: 1, kind: input, shape index: {}]
  %s2 = inlined_call_operand.vmem [shape: f32[8,1], index: 2, kind: output, shape index: {}]
  %s3 = sld [smem:[#allocation0]]
  $region26: #{tpu_custom_call.1} parent=0
    _
  %s5 = ssub.s32 1, %s3
  %s6 = scalar_select 0, %s5, %s3
  // Predicated region
  $region2: #{tpu_custom_call.1} parent=0 // pred_check
    _
  $region3: #{tpu_custom_call.1} parent=0 // pred_check_branch
    %8 = sbr.rel (0) target = $region5
  $region4: #{tpu_custom_call.1} parent=0 // pred_region
    _
  $region5: #{tpu_custom_call.1} parent=0 // pred_fallthru
    _
  // Predicated region
  $region6: #{tpu_custom_call.1} parent=0 // pred_check
    _
  $region7: #{tpu_custom_call.1} parent=0 // pred_check_branch
    %10 = sbr.rel (0) target = $region9
  $region8: #{tpu_custom_call.1} parent=0 // pred_region
    _
  $region9: #{tpu_custom_call.1} parent=0 // pred_fallthru
    _
  %p11 = scmp.eq.s32.totalorder 0, 0
  // Predicated region
  $region10: #{tpu_custom_call.1} parent=0 // pred_check
    %p12 = pneg %p11
  $region11: #{tpu_custom_call.1} parent=0 // pred_check_branch
    %14 = sbr.rel (%p12) target = $region13
  $region12: #{tpu_custom_call.1} parent=0 // pred_region
    %vm15 = vcmask 7168
    %16 = vst.msk [vmem:[#allocation2] sm:$0xff] %vm15, -inf
    %17 = vst.msk [vmem:[#allocation3] sm:$0xff] %vm15, 0.0
    %18 = vst.msk [vmem:[#allocation4] sm:$0xff] %vm15, 0.0
  $region13: #{tpu_custom_call.1} parent=0 // pred_fallthru
    _
  %v19 = vld [vmem:[%s0] sm:$0xff]
  %v20 = vld [vmem:[%s1] sm:$0xff]
  %v21 = vlaneseq
  %v22 = vand.u32 %v21, 127
  %s23 = smul.u32 0, 32
  %v24 = vstv %s23
  %v25 = vsub.s32 %v20, %v24
  %26 = vset.pattern.permute.xlu0 0
  %27 = vperm.xlu0 %26, %v25
  %v28 = vpop.permute.xlu0 %27
  %vm29 = vcmp.eq.s32.totalorder %v22, %v28
  %vm30 = vcmask 261120
  %v31 = vsel %vm30, %v19, -inf
  %32 = vmax.xlane.f32.xlu0 %v31
  %v33 = vpop.xlane.xlu0 %32
  %v34 = vld [vmem:[#allocation4] sm:$0xff]
  %v35 = vsel %vm29, %v19, 0.0
  %v36 = vsel %vm30, %v35, 0.0
  %37 = vadd.xlane.f32.xlu0 %v36
  %v38 = vpop.xlane.xlu0 %37
  %v39 = vadd.f32 %v34, %v38
  %vm40 = vcmask 7168
  %41 = vst.msk [vmem:[#allocation4] sm:$0xff] %vm40, %v39
  %v42 = vld [vmem:[#allocation2] sm:$0xff]
  %v43 = vmax.f32 %v42, %v33
  %v44 = vsub.f32 %v42, %v43
  %v45 = vmul.f32 %v44, 1.442695
  %v46 = vpow.pop %v45
  %v47 = vld [vmem:[#allocation3] sm:$0xff]
  %v48 = vmul.f32 %v46, %v47
  %50 = vset.pattern.permute.xlu0 0
  %51 = vperm.xlu0 %50, %v43
  %v52 = vpop.permute.xlu0 %51
  %v54 = vsub.f32 %v19, %v52
  %v55 = vmul.f32 %v54, 1.442695
  %v56 = vpow.pop %v55
  %v57 = vsel %vm30, %v56, 0.0
  %58 = vadd.xlane.f32.xlu0 %v57
  %v59 = vpop.xlane.xlu0 %58
  %v60 = vadd.f32 %v48, %v59
  %61 = vst.msk [vmem:[#allocation3] sm:$0xff] %vm40, %v60
  %62 = vst.msk [vmem:[#allocation2] sm:$0xff] %vm40, %v43
  // Predicated region
  $region14: #{tpu_custom_call.1} parent=0 // pred_check
    %p63 = pneg %p11
  $region15: #{tpu_custom_call.1} parent=0 // pred_check_branch
    %65 = sbr.rel (%p63) target = $region17
  $region16: #{tpu_custom_call.1} parent=0 // pred_region
    %v66 = vld [vmem:[#allocation2] sm:$0xff]
    %v67 = vld [vmem:[#allocation3] sm:$0xff]
    %v68 = vlog2.pop %v67
    %v69 = vmul.f32 %v68, 0.6931472
    %v70 = vadd.f32 %v66, %v69
    %v71 = vld [vmem:[#allocation4] sm:$0xff]
    %v72 = vsub.f32 %v70, %v71
    %73 = vst.msk [vmem:[%s2] sm:$0xff] %vm40, %v72
  $region17: #{tpu_custom_call.1} parent=0 // pred_fallthru
    _
  // Predicated region
  $region18: #{tpu_custom_call.1} parent=0 // pred_check
    _
  $region19: #{tpu_custom_call.1} parent=0 // pred_check_branch
    %75 = sbr.rel (0) target = $region21
  $region20: #{tpu_custom_call.1} parent=0 // pred_region
    _
  $region21: #{tpu_custom_call.1} parent=0 // pred_fallthru
    _
  // Predicated region
  $region22: #{tpu_custom_call.1} parent=0 // pred_check
    _
  $region23: #{tpu_custom_call.1} parent=0 // pred_check_branch
    %77 = sbr.rel (0) target = $region25
  $region24: #{tpu_custom_call.1} parent=0 // pred_region
    _
  $region25: #{tpu_custom_call.1} parent=0 // pred_fallthru
    _

</llo_original>
